<compile_context>
chip_gen: v7x
topology: tpu7x:2x2x1
jax: 0.10.0
libtpu: 0.0.40
codegen_flags: <defaults>
</compile_context>

<pallas_src>
import numpy as np
import jax
import jax.numpy as jnp
from jax.experimental import pallas as pl
from jax.experimental.pallas import tpu as pltpu


_TARGET_BLOCK_BYTES = 2 << 20  # ~2 MiB output block


def _fill_kernel(ax_ref, ayz_ref, o_ref):
    """o[c, x, yz] = ax[c, x, 0] + ayz[c, 0, yz] (then cast to output dtype)."""
    o_ref[...] = (ax_ref[...] + ayz_ref[...]).astype(o_ref.dtype)


def _largest_divisor_leq(n, k):
    k = int(max(1, min(n, k)))
    for d in range(k, 0, -1):
        if n % d == 0:
            return d
    return 1


def _pick_tiles(C, X, yz, itemsize, target_bytes=_TARGET_BLOCK_BYTES):
    """Pick (cb, xb): cb | C, xb | X, and xb is a multiple of 8 or equals X."""
    out_row = yz * itemsize            # one (c, x) row of the output block
    ax_row = 128 * 4                   # lane-padded (x, 1) f32 row of the ax table
    ayz_row = 8 * max(yz, 128) * 4     # padded (1, yz) f32 slab per channel
    per_cx = out_row + ax_row
    full_slab = X * per_cx + ayz_row   # VMEM for one whole channel (xb == X)
    if full_slab <= target_bytes:
        return _largest_divisor_leq(C, target_bytes // full_slab), X
    # One channel slab is already large: keep cb = 1 and chunk X (multiples of 8).
    xb = X
    if X % 8 == 0 and X > 8:
        want = max(8, int(target_bytes // per_cx))
        for cand in range(8, X + 1, 8):
            if X % cand == 0 and cand <= want:
                xb = cand
    return 1, xb


def positional_encoding_permute_3d(tensor):
    """Forward of PositionalEncodingPermute3D.

    tensor: (B, C, X, Y, Z)  ->  positional encoding of shape (B, C, X, Y, Z)
    """
    B, C, X, Y, Z = tensor.shape
    out_dtype = tensor.dtype
    yz = Y * Z
    itemsize = np.dtype(out_dtype).itemsize

    # --- parameter setup (mirrors PositionalEncoding3D.__init__) ---
    channels = int(np.ceil(C / 6) * 2)
    if channels % 2:
        channels += 1
    inv_freq = 1.0 / (10000.0 ** (np.arange(0, channels, 2, dtype=np.float32)
                                  / channels))                    # (channels//2,)

    # --- tiny separable 1-D sin/cos tables (host / trace-time, O((X+Y+Z)*ch)) ---
    def emb_1d(n):
        ang = np.arange(n, dtype=np.float32)[:, None] * inv_freq[None, :]
        e = np.stack([np.sin(ang), np.cos(ang)], axis=-1)         # (n, ch//2, 2)
        return e.reshape(n, channels)                             # (n, channels)

    emb_x, emb_y, emb_z = emb_1d(X), emb_1d(Y), emb_1d(Z)
    ch3 = 3 * channels
    ax_full = np.zeros((ch3, X), np.float32)
    ax_full[:channels] = emb_x.T
    ay_full = np.zeros((ch3, Y), np.float32)
    ay_full[channels:2 * channels] = emb_y.T
    az_full = np.zeros((ch3, Z), np.float32)
    az_full[2 * channels:] = emb_z.T

    # Only the first C of the 3*channels encoding channels are emitted.
    ax_np = ax_full[:C]                                            # (C, X)
    ayz_np = (ay_full[:C, :, None] + az_full[:C, None, :]).reshape(C, yz)  # (C, Y*Z)

    ax = jnp.asarray(ax_np)[:, :, None]      # (C, X, 1)
    ayz = jnp.asarray(ayz_np)[:, None, :]    # (C, 1, Y*Z)

    # --- block / grid selection ---
    cb, xb = _pick_tiles(C, X, yz, itemsize)
    # v7x has 2 TensorCores per chip: prefer >= 2 parallel grid steps if possible.
    if B * (C // cb) * (X // xb) < 2 and C > 1:
        cb = _largest_divisor_leq(C, max(1, C // 2))
    nc, nx = C // cb, X // xb

    out = pl.pallas_call(
        _fill_kernel,
        out_shape=jax.ShapeDtypeStruct((B, C, X, yz), out_dtype),
        grid_spec=pltpu.PrefetchScalarGridSpec(
            num_scalar_prefetch=0,
            grid=(B, nc, nx),
            in_specs=[
                pl.BlockSpec((cb, xb, 1), lambda b, ci, xi: (ci, xi, 0)),
                pl.BlockSpec((cb, 1, yz), lambda b, ci, xi: (ci, 0, 0)),
            ],
            out_specs=pl.BlockSpec((None, cb, xb, yz),
                                   lambda b, ci, xi: (b, ci, xi, 0)),
        ),
        compiler_params=pltpu.CompilerParams(
            dimension_semantics=("parallel", "parallel", "parallel"),
            vmem_limit_bytes=32 << 20,
        ),
        cost_estimate=pl.CostEstimate(
            flops=B * C * X * yz,
            transcendentals=0,
            bytes_accessed=B * C * X * yz * itemsize + C * (X + yz) * 4,
        ),
    )(ax, ayz)

    # Free (layout-preserving) reshape: (B, C, X, Y*Z) -> (B, C, X, Y, Z).
    return out.reshape(B, C, X, Y, Z)


def _reference_numpy(tensor):
    """Pure-numpy port of the PyTorch module for verification."""
    B, C, X, Y, Z = tensor.shape
    channels = int(np.ceil(C / 6) * 2)
    if channels % 2:
        channels += 1
    inv_freq = 1.0 / (10000.0 ** (np.arange(0, channels, 2).astype(np.float32)
                                  / channels))

    def get_emb(sin_inp):
        e = np.stack((np.sin(sin_inp), np.cos(sin_inp)), axis=-1)
        return e.reshape(*e.shape[:-2], -1)

    pos_x = np.arange(X, dtype=np.float32)
    pos_y = np.arange(Y, dtype=np.float32)
    pos_z = np.arange(Z, dtype=np.float32)
    emb_x = get_emb(np.einsum('i,j->ij', pos_x, inv_freq))[:, None, None, :]
    emb_y = get_emb(np.einsum('i,j->ij', pos_y, inv_freq))[None, :, None, :]
    emb_z = get_emb(np.einsum('i,j->ij', pos_z, inv_freq))[None, None, :, :]
    emb = np.zeros((X, Y, Z, channels * 3), dtype=np.float32)
    emb[..., :channels] = emb_x
    emb[..., channels:2 * channels] = emb_y
    emb[..., 2 * channels:] = emb_z
    penc = np.broadcast_to(emb[None, ..., :C], (B, X, Y, Z, C))
    return np.transpose(penc, (0, 4, 1, 2, 3))


if __name__ == "__main__":
    # TODO(synk): the PyTorch module's `cached_penc` Python-side caching has no
    # Pallas equivalent; rely on jit/XLA caching of this pure function instead.
    key = jax.random.PRNGKey(0)

    for (B, C, X, Y, Z) in [(2, 16, 8, 8, 8), (1, 7, 4, 5, 6)]:
        key, sub = jax.random.split(key)
        x = jax.random.normal(sub, (B, C, X, Y, Z), dtype=jnp.float32)
        out = jax.block_until_ready(positional_encoding_permute_3d(x))
        ref = _reference_numpy(np.asarray(x))
        assert out.shape == (B, C, X, Y, Z)
        np.testing.assert_allclose(np.asarray(out), ref, atol=1e-5, rtol=1e-5)

    print("KERNEL_OK")
</pallas_src>

<mosaic_0001>
module attributes {stable_mosaic.version = 11 : i64} {
  func.func @_fill_kernel(%arg0: i32, %arg1: i32, %arg2: i32, %arg3: memref<16x8x1xf32, #tpu.memory_space<vmem>>, %arg4: memref<16x1x64xf32, #tpu.memory_space<vmem>>, %arg5: memref<1x16x8x64xf32, #tpu.memory_space<vmem>>) attributes {dimension_semantics = [#tpu.dimension_semantics<parallel>, #tpu.dimension_semantics<parallel>, #tpu.dimension_semantics<parallel>], iteration_bounds = array<i64: 2, 1, 1>, scalar_prefetch = 0 : i64, scratch_operands = 0 : i64, tpu.core_type = #tpu.core_type<tc>, window_params = [{transform_indices = @transform_0, window_bounds = array<i64: 16, 8, 1>}, {transform_indices = @transform_1, window_bounds = array<i64: 16, 1, 64>}, {transform_indices = @transform_2, window_bounds = array<i64: 1, 16, 8, 64>}]} {
    %c0 = arith.constant 0 : index
    %c0_0 = arith.constant 0 : index
    %c0_1 = arith.constant 0 : index
    %0 = vector.load %arg3[%c0, %c0_0, %c0_1] : memref<16x8x1xf32, #tpu.memory_space<vmem>>, vector<16x8x1xf32>
    %c0_2 = arith.constant 0 : index
    %c0_3 = arith.constant 0 : index
    %c0_4 = arith.constant 0 : index
    %1 = vector.load %arg4[%c0_2, %c0_3, %c0_4] : memref<16x1x64xf32, #tpu.memory_space<vmem>>, vector<16x1x64xf32>
    %2 = vector.broadcast %0 : vector<16x8x1xf32> to vector<16x8x64xf32>
    %3 = vector.broadcast %1 : vector<16x1x64xf32> to vector<16x8x64xf32>
    %4 = arith.addf %2, %3 : vector<16x8x64xf32>
    %c0_5 = arith.constant 0 : index
    %c0_6 = arith.constant 0 : index
    %c0_7 = arith.constant 0 : index
    %c0_8 = arith.constant 0 : index
    %5 = vector.load %arg5[%c0_5, %c0_6, %c0_7, %c0_8] : memref<1x16x8x64xf32, #tpu.memory_space<vmem>>, vector<1x16x8x64xf32>
    %6 = vector.shape_cast %5 : vector<1x16x8x64xf32> to vector<16x8x64xf32>
    %7 = vector.shape_cast %4 : vector<16x8x64xf32> to vector<1x16x8x64xf32>
    tpu.vector_store %arg5[%c0_5, %c0_6, %c0_7, %c0_8], %7 {strides = array<i32>} : memref<1x16x8x64xf32, #tpu.memory_space<vmem>>, vector<1x16x8x64xf32>,
    return
  }
  func.func @transform_0(%arg0: i32, %arg1: i32, %arg2: i32) -> (i32, i32, i32) {
    %c0_i32 = arith.constant 0 : i32
    %c0_i32_0 = arith.constant 0 : i32
    return %arg1, %arg2, %c0_i32 : i32, i32, i32
  }
  func.func @transform_1(%arg0: i32, %arg1: i32, %arg2: i32) -> (i32, i32, i32) {
    %c0_i32 = arith.constant 0 : i32
    %c0_i32_0 = arith.constant 0 : i32
    %c0_i32_1 = arith.constant 0 : i32
    return %arg1, %c0_i32, %c0_i32_0 : i32, i32, i32
  }
  func.func @transform_2(%arg0: i32, %arg1: i32, %arg2: i32) -> (i32, i32, i32, i32) {
    %c0_i32 = arith.constant 0 : i32
    %c0_i32_0 = arith.constant 0 : i32
    return %arg0, %arg1, %arg2, %c0_i32 : i32, i32, i32, i32
  }
}

</mosaic_0001>

<llo_original>
// kernel: tpu_custom_call.1
$region0: #{tpu_custom_call.1}
  #allocation0 [shape = 'u32[]', space=smem, size = 0x4, offset = 0x4, fixed_abs, tag = 'smem constant byte address 0x4 - core index']
  #allocation1 [shape = 'u32[144,128]{1,0:T(1,128)}', space=vmem, size = 0x12000, scoped, tag = 'internal scratch']
  %s0 = inlined_call_operand.vmem [shape: f32[16,8,1], index: 0, kind: input, shape index: {}]
  %s1 = inlined_call_operand.vmem [shape: f32[16,1,64], index: 1, kind: input, shape index: {}]
  %s2 = inlined_call_operand.hbm [shape: f32[2,16,8,64], index: 2, kind: output, shape index: {}]
  %s3 = sld [smem:[#allocation0]]
  $region41: #{tpu_custom_call.1} parent=0
    _
  %s5 = ssub.s32 1, %s3
  %s6 = scalar_select 0, %s5, %s3
  $region1: #{tpu_custom_call.1} parent=0
    #allocation2 [shape = 'u8[131072]{0}', space=vmem, size = 0x20000, scoped, tag = 'output window, operand 0']
    #allocation3 [shape = 's32[2]{0}', space=sflag, size = 0x8, scoped, tag = 'scoped memory for tpu_custom_call.1']
    %7 = vsyncpa [#allocation3], 0
    %s8 = scalar_lea.sflag [#allocation3], 1
    %9 = vsyncpa %s8, 0
    loop: start=0, step=1, limit=4
    $region2: #{tpu_custom_call.1} parent=1 // loop_pre_header
      _
    $region3: #{tpu_custom_call.1} parent=1 // loop_header
      %s11 = sphi 0, %s15
      %p12 = scmp.ge.s32.totalorder %s11, 4
      %s18 = sphi 0, %s37
      %s19 = sphi 0, %s33
      %s20 = sphi 0, %s29
      %s21 = sphi 0, %s18
      %s22 = sphi 0, %s19
      %s23 = sphi 0, %s20
      %s24 = sphi 0, %s21
      %s25 = sphi 0, %s22
      %s26 = sphi 0, %s23
      %s42 = sphi 0, %s44
      %s45 = sphi 0, %s42
      %s46 = sphi 0, %s45
      %s62 = sphi 0, %s46
      %s68 = sphi 0, %s70
      %s71 = sphi 0, %s68
      %s72 = sphi 0, %s71
      %s88 = sphi 0, %s72
      %s98 = sphi 0, %s100
      %s101 = sphi 0, %s98
      %s102 = sphi 0, %s101
      %s118 = sphi 0, %s102
    $region4: #{tpu_custom_call.1} parent=1 // loop_header_branch
      %14 = sbr.rel (%p12) target = $region8
    $region5: #{tpu_custom_call.1} parent=1 // loop_body
      %s16 = ssub.s32 %s11, 1
      %s17 = ssub.s32 %s11, 2
      %s27 = sadd.s32 1, %s20
      %p28 = scmp.ge.s32.totalorder %s27, 1
      %s29 = scalar_select %p28, 0, %s27
      %s30 = sadd.s32 1, %s19
      %s31 = scalar_select %p28, %s30, %s19
      %p32 = scmp.ge.s32.totalorder %s31, 1
      %s33 = scalar_select %p32, 0, %s31
      %s34 = sadd.s32 1, %s18
      %s35 = scalar_select %p32, %s34, %s18
      %p36 = scmp.ge.s32.totalorder %s35, 2
      %s37 = scalar_select %p36, 0, %s35
      %s38 = ssub.s32 %s19, %s33
      %s39 = ssub.s32 %s20, %s29
      %s40 = sor.u32 %s38, %s39
      %p41 = scmp.eq.s32.totalorder %s40, 0
      %s43 = sadd.s32 %s42, 1
      %s44 = scalar_select %p41, %s42, %s43
      %p47 = pneg %p41
      %p48 = scmp.eq.s32.totalorder %s11, 1
      %p49 = por %p47, %p48
      %p50 = scmp.ne.s32.totalorder %s42, %s45
      %p51 = scmp.eq.s32.totalorder %s11, 0
      %p52 = por %p50, %p51
      %p53 = scmp.ne.s32.totalorder %s42, %s45
      %p54 = scmp.eq.s32.totalorder %s16, 1
      %p55 = por %p53, %p54
      %p56 = scmp.ne.s32.totalorder %s45, %s46
      %p57 = scmp.eq.s32.totalorder %s16, 0
      %p58 = por %p56, %p57
      %p59 = scmp.ne.s32.totalorder %s45, %s46
      %p60 = scmp.eq.s32.totalorder %s17, 1
      %p61 = por %p59, %p60
      %p63 = scmp.ne.s32.totalorder %s46, %s62
      %p64 = scmp.eq.s32.totalorder %s17, 0
      %p65 = por %p63, %p64
      %s66 = ssub.s32 %s19, %s33
      %p67 = scmp.eq.s32.totalorder %s66, 0
      %s69 = sadd.s32 %s68, 1
      %s70 = scalar_select %p67, %s68, %s69
      %p73 = pneg %p67
      %p74 = scmp.eq.s32.totalorder %s11, 1
      %p75 = por %p73, %p74
      %p76 = scmp.ne.s32.totalorder %s68, %s71
      %p77 = scmp.eq.s32.totalorder %s11, 0
      %p78 = por %p76, %p77
      %p79 = scmp.ne.s32.totalorder %s68, %s71
      %p80 = scmp.eq.s32.totalorder %s16, 1
      %p81 = por %p79, %p80
      %p82 = scmp.ne.s32.totalorder %s71, %s72
      %p83 = scmp.eq.s32.totalorder %s16, 0
      %p84 = por %p82, %p83
      %p85 = scmp.ne.s32.totalorder %s71, %s72
      %p86 = scmp.eq.s32.totalorder %s17, 1
      %p87 = por %p85, %p86
      %p89 = scmp.ne.s32.totalorder %s72, %s88
      %p90 = scmp.eq.s32.totalorder %s17, 0
      %p91 = por %p89, %p90
      %s92 = ssub.s32 %s18, %s37
      %s93 = ssub.s32 %s19, %s33
      %s94 = sor.u32 %s92, %s93
      %s95 = ssub.s32 %s20, %s29
      %s96 = sor.u32 %s94, %s95
      %p97 = scmp.eq.s32.totalorder %s96, 0
      %s99 = sadd.s32 %s98, 1
      %s100 = scalar_select %p97, %s98, %s99
      %p103 = pneg %p97
      %p104 = scmp.eq.s32.totalorder %s11, 1
      %p105 = por %p103, %p104
      %p106 = scmp.ne.s32.totalorder %s98, %s101
      %p107 = scmp.eq.s32.totalorder %s11, 0
      %p108 = por %p106, %p107
      %p109 = scmp.ne.s32.totalorder %s98, %s101
      %p110 = scmp.eq.s32.totalorder %s16, 1
      %p111 = por %p109, %p110
      %p112 = scmp.ne.s32.totalorder %s101, %s102
      %p113 = scmp.eq.s32.totalorder %s16, 0
      %p114 = por %p112, %p113
      %p115 = scmp.ne.s32.totalorder %s101, %s102
      %p116 = scmp.eq.s32.totalorder %s17, 1
      %p117 = por %p115, %p116
      %p119 = scmp.ne.s32.totalorder %s102, %s118
      %p120 = scmp.eq.s32.totalorder %s17, 0
      %p121 = por %p119, %p120
      %p122 = scmp.le.s32.totalorder 1, %s11
      %p123 = scmp.lt.s32.totalorder %s11, 3
      %p124 = pnand %p122, %p123
      %p125 = pneg %p124
      // Predicated region
      $region9: #{tpu_custom_call.1} parent=5 // pred_check
        _
      $region10: #{tpu_custom_call.1} parent=5 // pred_check_branch
        %127 = sbr.rel (%p124) target = $region12
      $region11: #{tpu_custom_call.1} parent=5 // pred_region
        %s128 = ssub.s32 %s11, 1
        // Predicated region
        $region13: #{tpu_custom_call.1} parent=11 // pred_check
          %p129 = pneg %p58
        $region14: #{tpu_custom_call.1} parent=11 // pred_check_branch
          %131 = sbr.rel (%p129) target = $region16
        $region15: #{tpu_custom_call.1} parent=11 // pred_region
          %s132 = smul.u32 16, %s22
          %p133 = scmp.lt.s32.totalorder %s132, 15
          %s134 = scalar_select %p133, %s132, 15
          %p135 = scmp.lt.s32.totalorder %s23, 0
          %s136 = scalar_select %p135, %s23, 0
          %s137 = sadd.s32 %s136, %s134
          %s138 = smul.addr %s137, 8
          %s139 = scalar_lea.vmem %s0, %s138
          %s140 = smul.u32 16, %s22
        $region16: #{tpu_custom_call.1} parent=11 // pred_fallthru
          _
        // Predicated region
        $region17: #{tpu_custom_call.1} parent=11 // pred_check
          %p141 = pneg %p84
        $region18: #{tpu_custom_call.1} parent=11 // pred_check_branch
          %143 = sbr.rel (%p141) target = $region20
        $region19: #{tpu_custom_call.1} parent=11 // pred_region
          %s144 = smul.u32 16, %s22
          %p145 = scmp.lt.s32.totalorder %s144, 15
          %s146 = scalar_select %p145, %s144, 15
          %s147 = scalar_lea.vmem %s1, %s146
          %s148 = smul.u32 16, %s22
        $region20: #{tpu_custom_call.1} parent=11 // pred_fallthru
          _
      $region12: #{tpu_custom_call.1} parent=5 // pred_fallthru
        _
      %p149 = scmp.lt.s32.totalorder %s11, 2
      // Predicated region
      $region21: #{tpu_custom_call.1} parent=5 // pred_check
        %p150 = pneg %p149
      $region22: #{tpu_custom_call.1} parent=5 // pred_check_branch
        %152 = sbr.rel (%p150) target = $region24
      $region23: #{tpu_custom_call.1} parent=5 // pred_region
        _
      $region24: #{tpu_custom_call.1} parent=5 // pred_fallthru
        _
      %p153 = scmp.le.s32.totalorder 1, %s11
      %p154 = scmp.lt.s32.totalorder %s11, 3
      %p155 = pnand %p153, %p154
      %p156 = pneg %p155
      // Predicated region
      $region25: #{tpu_custom_call.1} parent=5 // pred_check
        _
      $region26: #{tpu_custom_call.1} parent=5 // pred_check_branch
        %158 = sbr.rel (%p155) target = $region28
      $region27: #{tpu_custom_call.1} parent=5 // pred_region
        %s159 = ssub.s32 %s11, 1
        %s160 = smul.u32 16, %s22
        %p161 = scmp.lt.s32.totalorder %s160, 15
        %s162 = scalar_select %p161, %s160, 15
        %p163 = scmp.lt.s32.totalorder %s23, 0
        %s164 = scalar_select %p163, %s23, 0
        %s165 = sadd.s32 %s164, %s162
        %s166 = smul.addr %s165, 8
        %s167 = scalar_lea.vmem %s0, %s166
        %p168 = pneg %p58
        %p169 = pneg %p55
        %s170 = smul.u32 16, %s22
        %p171 = scmp.lt.s32.totalorder %s170, 15
        %s172 = scalar_select %p171, %s170, 15
        %s173 = scalar_lea.vmem %s1, %s172
        %p174 = pneg %p84
        %p175 = pneg %p81
        %p176 = pneg %p114
        %p177 = pneg %p111
        %s178 = sand.u32 %s101, 1
        %s179 = scalar_lea.sflag [#allocation3], %s178
        %s180 = sand.u32 %s101, 1
        %s181 = smul.addr %s180, 128
        %s182 = scalar_lea.vmem [#allocation2], %s181
        %s183 = smul.u32 16, %s22
        %p184 = scmp.lt.s32.totalorder %s183, 15
        %s185 = scalar_select %p184, %s183, 15
        %p186 = scmp.lt.s32.totalorder %s23, 0
        %s187 = scalar_select %p186, %s23, 0
        %s188 = sadd.s32 %s187, %s185
        %s189 = smul.addr %s188, 8
        %s190 = scalar_lea.vmem %s0, %s189
        %s191 = smul.u32 16, %s22
        %s192 = smul.u32 16, %s22
        %p193 = scmp.lt.s32.totalorder %s192, 15
        %s194 = scalar_select %p193, %s192, 15
        %s195 = scalar_lea.vmem %s1, %s194
        %s196 = smul.u32 16, %s22
        %s197 = smul.u32 16, %s22
        %v198 = vld [vmem:[%s190] sm:$0xff]
        %v199 = vld [vmem:[%s190 + $0x8] sm:$0xff]
        %v200 = vld [vmem:[%s190 + $0x10] sm:$0xff]
        %v201 = vld [vmem:[%s190 + $0x18] sm:$0xff]
        %v202 = vld [vmem:[%s190 + $0x20] sm:$0xff]
        %v203 = vld [vmem:[%s190 + $0x28] sm:$0xff]
        %v204 = vld [vmem:[%s190 + $0x30] sm:$0xff]
        %v205 = vld [vmem:[%s190 + $0x38] sm:$0xff]
        %v206 = vld [vmem:[%s190 + $0x40] sm:$0xff]
        %v207 = vld [vmem:[%s190 + $0x48] sm:$0xff]
        %v208 = vld [vmem:[%s190 + $0x50] sm:$0xff]
        %v209 = vld [vmem:[%s190 + $0x58] sm:$0xff]
        %v210 = vld [vmem:[%s190 + $0x60] sm:$0xff]
        %v211 = vld [vmem:[%s190 + $0x68] sm:$0xff]
        %v212 = vld [vmem:[%s190 + $0x70] sm:$0xff]
        %v213 = vld [vmem:[%s190 + $0x78] sm:$0xff]
        %v214 = vld [vmem:[%s195] sm:$0x1]
        %v215 = vld [vmem:[%s195 + $0x1] sm:$0x1]
        %v216 = vld [vmem:[%s195 + $0x2] sm:$0x1]
        %v217 = vld [vmem:[%s195 + $0x3] sm:$0x1]
        %v218 = vld [vmem:[%s195 + $0x4] sm:$0x1]
        %v219 = vld [vmem:[%s195 + $0x5] sm:$0x1]
        %v220 = vld [vmem:[%s195 + $0x6] sm:$0x1]
        %v221 = vld [vmem:[%s195 + $0x7] sm:$0x1]
        %v222 = vld [vmem:[%s195 + $0x8] sm:$0x1]
        %v223 = vld [vmem:[%s195 + $0x9] sm:$0x1]
        %v224 = vld [vmem:[%s195 + $0xa] sm:$0x1]
        %v225 = vld [vmem:[%s195 + $0xb] sm:$0x1]
        %v226 = vld [vmem:[%s195 + $0xc] sm:$0x1]
        %v227 = vld [vmem:[%s195 + $0xd] sm:$0x1]
        %v228 = vld [vmem:[%s195 + $0xe] sm:$0x1]
        %v229 = vld [vmem:[%s195 + $0xf] sm:$0x1]
        %231 = vset.pattern.permute.xlu0 0
        %232 = vperm.xlu0 %231, %v198
        %v233 = vpop.permute.xlu0 %232
        %236 = vset.pattern.permute.xlu0 0
        %237 = vperm.xlu0 %236, %v199
        %v238 = vpop.permute.xlu0 %237
        %241 = vset.pattern.permute.xlu0 0
        %242 = vperm.xlu0 %241, %v200
        %v243 = vpop.permute.xlu0 %242
        %246 = vset.pattern.permute.xlu0 0
        %247 = vperm.xlu0 %246, %v201
        %v248 = vpop.permute.xlu0 %247
        %251 = vset.pattern.permute.xlu0 0
        %252 = vperm.xlu0 %251, %v202
        %v253 = vpop.permute.xlu0 %252
        %256 = vset.pattern.permute.xlu0 0
        %257 = vperm.xlu0 %256, %v203
        %v258 = vpop.permute.xlu0 %257
        %261 = vset.pattern.permute.xlu0 0
        %262 = vperm.xlu0 %261, %v204
        %v263 = vpop.permute.xlu0 %262
        %266 = vset.pattern.permute.xlu0 0
        %267 = vperm.xlu0 %266, %v205
        %v268 = vpop.permute.xlu0 %267
        %271 = vset.pattern.permute.xlu0 0
        %272 = vperm.xlu0 %271, %v206
        %v273 = vpop.permute.xlu0 %272
        %276 = vset.pattern.permute.xlu0 0
        %277 = vperm.xlu0 %276, %v207
        %v278 = vpop.permute.xlu0 %277
        %281 = vset.pattern.permute.xlu0 0
        %282 = vperm.xlu0 %281, %v208
        %v283 = vpop.permute.xlu0 %282
        %286 = vset.pattern.permute.xlu0 0
        %287 = vperm.xlu0 %286, %v209
        %v288 = vpop.permute.xlu0 %287
        %291 = vset.pattern.permute.xlu0 0
        %292 = vperm.xlu0 %291, %v210
        %v293 = vpop.permute.xlu0 %292
        %296 = vset.pattern.permute.xlu0 0
        %297 = vperm.xlu0 %296, %v211
        %v298 = vpop.permute.xlu0 %297
        %301 = vset.pattern.permute.xlu0 0
        %302 = vperm.xlu0 %301, %v212
        %v303 = vpop.permute.xlu0 %302
        %306 = vset.pattern.permute.xlu0 0
        %307 = vperm.xlu0 %306, %v213
        %v308 = vpop.permute.xlu0 %307
        %v326 = vlaneseq
        %v327 = vshrl.u32 %v326, 7
        %v328 = vsub.s32 0, %v327
        %v329 = vrot.slane %v214, %v328
        %v330 = vlaneseq
        %v331 = vshrl.u32 %v330, 7
        %v332 = vsub.s32 0, %v331
        %v333 = vrot.slane %v215, %v332
        %v334 = vlaneseq
        %v335 = vshrl.u32 %v334, 7
        %v336 = vsub.s32 0, %v335
        %v337 = vrot.slane %v216, %v336
        %v338 = vlaneseq
        %v339 = vshrl.u32 %v338, 7
        %v340 = vsub.s32 0, %v339
        %v341 = vrot.slane %v217, %v340
        %v342 = vlaneseq
        %v343 = vshrl.u32 %v342, 7
        %v344 = vsub.s32 0, %v343
        %v345 = vrot.slane %v218, %v344
        %v346 = vlaneseq
        %v347 = vshrl.u32 %v346, 7
        %v348 = vsub.s32 0, %v347
        %v349 = vrot.slane %v219, %v348
        %v350 = vlaneseq
        %v351 = vshrl.u32 %v350, 7
        %v352 = vsub.s32 0, %v351
        %v353 = vrot.slane %v220, %v352
        %v354 = vlaneseq
        %v355 = vshrl.u32 %v354, 7
        %v356 = vsub.s32 0, %v355
        %v357 = vrot.slane %v221, %v356
        %v358 = vlaneseq
        %v359 = vshrl.u32 %v358, 7
        %v360 = vsub.s32 0, %v359
        %v361 = vrot.slane %v222, %v360
        %v362 = vlaneseq
        %v363 = vshrl.u32 %v362, 7
        %v364 = vsub.s32 0, %v363
        %v365 = vrot.slane %v223, %v364
        %v366 = vlaneseq
        %v367 = vshrl.u32 %v366, 7
        %v368 = vsub.s32 0, %v367
        %v369 = vrot.slane %v224, %v368
        %v370 = vlaneseq
        %v371 = vshrl.u32 %v370, 7
        %v372 = vsub.s32 0, %v371
        %v373 = vrot.slane %v225, %v372
        %v374 = vlaneseq
        %v375 = vshrl.u32 %v374, 7
        %v376 = vsub.s32 0, %v375
        %v377 = vrot.slane %v226, %v376
        %v378 = vlaneseq
        %v379 = vshrl.u32 %v378, 7
        %v380 = vsub.s32 0, %v379
        %v381 = vrot.slane %v227, %v380
        %v382 = vlaneseq
        %v383 = vshrl.u32 %v382, 7
        %v384 = vsub.s32 0, %v383
        %v385 = vrot.slane %v228, %v384
        %v386 = vlaneseq
        %v387 = vshrl.u32 %v386, 7
        %v388 = vsub.s32 0, %v387
        %v389 = vrot.slane %v229, %v388
        %v406 = vadd.f32 %v233, %v329
        %v407 = vadd.f32 %v238, %v333
        %v408 = vadd.f32 %v243, %v337
        %v409 = vadd.f32 %v248, %v341
        %v410 = vadd.f32 %v253, %v345
        %v411 = vadd.f32 %v258, %v349
        %v412 = vadd.f32 %v263, %v353
        %v413 = vadd.f32 %v268, %v357
        %v414 = vadd.f32 %v273, %v361
        %v415 = vadd.f32 %v278, %v365
        %v416 = vadd.f32 %v283, %v369
        %v417 = vadd.f32 %v288, %v373
        %v418 = vadd.f32 %v293, %v377
        %v419 = vadd.f32 %v298, %v381
        %v420 = vadd.f32 %v303, %v385
        %v421 = vadd.f32 %v308, %v389
        %vm422 = vcmask 523264
        %423 = vst.msk [vmem:[%s182] sm:$0xff] %vm422, %v406
        %424 = vst.msk [vmem:[%s182 + $0x8] sm:$0xff] %vm422, %v407
        %425 = vst.msk [vmem:[%s182 + $0x10] sm:$0xff] %vm422, %v408
        %426 = vst.msk [vmem:[%s182 + $0x18] sm:$0xff] %vm422, %v409
        %427 = vst.msk [vmem:[%s182 + $0x20] sm:$0xff] %vm422, %v410
        %428 = vst.msk [vmem:[%s182 + $0x28] sm:$0xff] %vm422, %v411
        %429 = vst.msk [vmem:[%s182 + $0x30] sm:$0xff] %vm422, %v412
        %430 = vst.msk [vmem:[%s182 + $0x38] sm:$0xff] %vm422, %v413
        %431 = vst.msk [vmem:[%s182 + $0x40] sm:$0xff] %vm422, %v414
        %432 = vst.msk [vmem:[%s182 + $0x48] sm:$0xff] %vm422, %v415
        %433 = vst.msk [vmem:[%s182 + $0x50] sm:$0xff] %vm422, %v416
        %434 = vst.msk [vmem:[%s182 + $0x58] sm:$0xff] %vm422, %v417
        %435 = vst.msk [vmem:[%s182 + $0x60] sm:$0xff] %vm422, %v418
        %436 = vst.msk [vmem:[%s182 + $0x68] sm:$0xff] %vm422, %v419
        %437 = vst.msk [vmem:[%s182 + $0x70] sm:$0xff] %vm422, %v420
        %438 = vst.msk [vmem:[%s182 + $0x78] sm:$0xff] %vm422, %v421
        %s439 = sand.u32 %s101, 1
        %s440 = scalar_lea.sflag [#allocation3], %s439
        %s441 = sand.u32 %s101, 1
        %s442 = smul.addr %s441, 128
        %s443 = scalar_lea.vmem [#allocation2], %s442
        // Predicated region
        $region29: #{tpu_custom_call.1} parent=27 // pred_check
          %p444 = pneg %p111
        $region30: #{tpu_custom_call.1} parent=27 // pred_check_branch
          %446 = sbr.rel (%p444) target = $region32
        $region31: #{tpu_custom_call.1} parent=27 // pred_region
          %s447 = smul.u32 16, %s22
          %s449 = ssub.s32 2048, 2048
          %450 = vsyncadd %s440, %s449
          %s451 = sadd.s32 %s23, %s447
          %s452 = smul.addr %s21, 16
          %s453 = sadd.s32 %s451, %s452
          %s454 = smul.addr %s453, 128
          %s455 = scalar_lea.hbm %s2, %s454
          %s456 = sshll.u32 %s443, 4
          %s457 = int_to_ptr.vmem [resolvable:$true] %s456
          %462 = dma.vmem_to_hbm [thread:$0]  %s457, 2048, %s455, %s440, 128, 128, 8
        $region32: #{tpu_custom_call.1} parent=27 // pred_fallthru
          _
      $region28: #{tpu_custom_call.1} parent=5 // pred_fallthru
        _
      %p463 = scmp.le.s32.totalorder 2, %s11
      // Predicated region
      $region33: #{tpu_custom_call.1} parent=5 // pred_check
        %p464 = pneg %p463
      $region34: #{tpu_custom_call.1} parent=5 // pred_check_branch
        %466 = sbr.rel (%p464) target = $region36
      $region35: #{tpu_custom_call.1} parent=5 // pred_region
        %s467 = ssub.s32 %s11, 2
        // Predicated region
        $region37: #{tpu_custom_call.1} parent=35 // pred_check
          %p468 = pneg %p117
        $region38: #{tpu_custom_call.1} parent=35 // pred_check_branch
          %470 = sbr.rel (%p468) target = $region40
        $region39: #{tpu_custom_call.1} parent=35 // pred_region
          %s471 = sand.u32 %s102, 1
          %s472 = scalar_lea.sflag [#allocation3], %s471
          %s473 = sand.u32 %s102, 1
          %s474 = smul.addr %s473, 128
          %s475 = scalar_lea.vmem [#allocation2], %s474
          %476 = dma.done %s472, 2048
        $region40: #{tpu_custom_call.1} parent=35 // pred_fallthru
          _
      $region36: #{tpu_custom_call.1} parent=5 // pred_fallthru
        _
    $region6: #{tpu_custom_call.1} parent=1 // loop_footer
      %s15 = sadd.s32 1, %s11
    $region7: #{tpu_custom_call.1} parent=1 // loop_footer_branch
      %10 = sbr.rel target = $region3
    $region8: #{tpu_custom_call.1} parent=1 // loop_exit
      _
    %477 = vsyncpa [#allocation3], 1
    %s478 = scalar_lea.sflag [#allocation3], 1
    %479 = vsyncpa %s478, 1

</llo_original>
